<compile_context>
chip_gen: v5e
topology: v5e:2x2
jax: 0.10.0
libtpu: 0.0.40
codegen_flags: <defaults>
</compile_context>

<pallas_src>
import jax
import jax.numpy as jnp
from jax.experimental import pallas as pl
from jax.experimental.pallas import tpu as pltpu

# ---- model hyperparameters (match the PyTorch module) ----
n_class = 32    # vocab size
n_step = 8      # context length
m = 16          # embedding dim
n_hidden = 32   # hidden dim
batch = 4

K = n_step * m                                            # 128: x-side contraction dim
N_PAD = ((n_class + n_hidden + 127) // 128) * 128         # 128: lane-dense fused width
BLOCK_B = 256                                             # batch rows per grid step (cap)


def _round_up(x, k):
    return (x + k - 1) // k * k


def nnlm_kernel(x_ref, hw_ref, bias_ref, u_ref, out_ref):
    # x_ref:    [TM, K]        bf16  flattened embeddings (one batch tile)
    # hw_ref:   [K, N_PAD]     bf16  cols[0:n_class]=W^T, cols[n_class:n_class+n_hidden]=H^T, rest 0
    # bias_ref: [1, N_PAD]     f32   cols[0:n_class]=b,   cols[n_class:n_class+n_hidden]=d,   rest 0
    # u_ref:    [N_PAD, N_PAD] bf16  rows[n_class:n_class+n_hidden], cols[0:n_class]=U^T, rest 0
    # out_ref:  [TM, N_PAD]    f32   cols[0:n_class] are the logits, remaining lanes are scratch
    xw = jnp.dot(x_ref[...], hw_ref[...], preferred_element_type=jnp.float32)
    xw = xw + bias_ref[...]                       # f32 elementwise
    hidden = jnp.tanh(xw)                         # full-vreg tanh; padded cols nulled by zero U rows
    out_ref[...] = xw + jnp.dot(hidden.astype(u_ref.dtype), u_ref[...],
                                preferred_element_type=jnp.float32)


def nnlm_forward(X, C, H_w, d, U_w, W_w, b):
    """X: [B, n_step] int32 token indices. Returns logits [B, n_class] float32."""
    B = X.shape[0]

    # --- batch padding / tiling: at least one full (8,128) f32 tile per block ---
    tm = min(BLOCK_B, _round_up(B, 8))
    Bp = _round_up(B, tm)
    Xp = jnp.pad(X, ((0, Bp - B), (0, 0)))        # pad rows with token 0 (sliced off below)

    # --- embedding lookup + flatten (co-jitted with the kernel: single dispatch) ---
    # TODO(synk): could fuse the gather in-kernel via scalar-prefetched indices +
    # pl.Element row gather on C; at these sizes co-jitting already removes the
    # extra HBM round-trip dispatch.
    x_flat = jnp.take(C, Xp, axis=0).reshape(Bp, K).astype(jnp.bfloat16)

    # --- fused / padded weights: one lane-dense [K, 128] x-side matmul ---
    HW = jnp.concatenate([W_w.T, H_w.T], axis=1)                        # [K, n_class+n_hidden]
    HW = jnp.pad(HW, ((0, 0), (0, N_PAD - (n_class + n_hidden)))).astype(jnp.bfloat16)

    U_pad = jnp.zeros((N_PAD, N_PAD), jnp.float32)
    U_pad = U_pad.at[n_class:n_class + n_hidden, :n_class].set(U_w.T).astype(jnp.bfloat16)

    bias = jnp.zeros((1, N_PAD), jnp.float32)
    bias = bias.at[0, :n_class].set(b).at[0, n_class:n_class + n_hidden].set(d)

    out = pl.pallas_call(
        nnlm_kernel,
        out_shape=jax.ShapeDtypeStruct((Bp, N_PAD), jnp.float32),
        grid_spec=pltpu.PrefetchScalarGridSpec(
            num_scalar_prefetch=0,
            grid=(Bp // tm,),
            in_specs=[
                pl.BlockSpec((tm, K), lambda i: (i, 0)),          # stream x batch tiles
                pl.BlockSpec((K, N_PAD), lambda i: (0, 0)),       # resident fused W|H
                pl.BlockSpec((1, N_PAD), lambda i: (0, 0)),       # resident fused bias
                pl.BlockSpec((N_PAD, N_PAD), lambda i: (0, 0)),   # resident padded U
            ],
            out_specs=pl.BlockSpec((tm, N_PAD), lambda i: (i, 0)),
        ),
        compiler_params=pltpu.CompilerParams(
            dimension_semantics=("parallel",)),
    )(x_flat, HW, bias, U_pad)

    return out[:B, :n_class]


nnlm_forward_jit = jax.jit(nnlm_forward)


if __name__ == "__main__":
    key = jax.random.PRNGKey(0)
    k_emb, k_H, k_U, k_W, k_x = jax.random.split(key, 5)

    # Deterministic synthetic parameters (shapes match nn.Module __init__).
    C = jax.random.normal(k_emb, (n_class, m), dtype=jnp.float32) * 0.1
    H_w = jax.random.normal(k_H, (n_hidden, n_step * m), dtype=jnp.float32) * 0.1
    U_w = jax.random.normal(k_U, (n_class, n_hidden), dtype=jnp.float32) * 0.1
    W_w = jax.random.normal(k_W, (n_class, n_step * m), dtype=jnp.float32) * 0.1
    d = jnp.ones((n_hidden,), dtype=jnp.float32)   # torch.ones(n_hidden)
    b = jnp.ones((n_class,), dtype=jnp.float32)    # torch.ones(n_class)

    # Example input: [batch, n_step] token indices.
    X = jax.random.randint(k_x, (batch, n_step), 0, n_class, dtype=jnp.int32)

    out = nnlm_forward_jit(X, C, H_w, d, U_w, W_w, b)
    out = jax.block_until_ready(out)

    # Reference check in plain JAX/f32 (same math as the PyTorch forward).
    x_flat = jnp.take(C, X, axis=0).reshape(batch, n_step * m)
    hidden_ref = jnp.tanh(d + x_flat @ H_w.T)
    ref = b + x_flat @ W_w.T + hidden_ref @ U_w.T
    assert out.shape == (batch, n_class)
    # bf16 matmul operands with f32 accumulation -> loosened tolerance.
    assert jnp.allclose(out, ref, atol=2e-2, rtol=2e-2), float(jnp.max(jnp.abs(out - ref)))

    print("KERNEL_OK")
</pallas_src>

<mosaic_0001>
module attributes {stable_mosaic.version = 11 : i64} {
  func.func @nnlm_kernel(%arg0: i32, %arg1: memref<8x128xbf16, #tpu.memory_space<vmem>>, %arg2: memref<128x128xbf16, #tpu.memory_space<vmem>>, %arg3: memref<1x128xf32, #tpu.memory_space<vmem>>, %arg4: memref<128x128xbf16, #tpu.memory_space<vmem>>, %arg5: memref<8x128xf32, #tpu.memory_space<vmem>>) attributes {dimension_semantics = [#tpu.dimension_semantics<parallel>], iteration_bounds = array<i64: 1>, scalar_prefetch = 0 : i64, scratch_operands = 0 : i64, tpu.core_type = #tpu.core_type<tc>, window_params = [{transform_indices = @transform_0, window_bounds = array<i64: 8, 128>}, {pipeline_mode = #tpu.pipeline_mode<synchronous>, transform_indices = @transform_1, window_bounds = array<i64: 128, 128>}, {pipeline_mode = #tpu.pipeline_mode<synchronous>, transform_indices = @transform_2, window_bounds = array<i64: 1, 128>}, {pipeline_mode = #tpu.pipeline_mode<synchronous>, transform_indices = @transform_3, window_bounds = array<i64: 128, 128>}, {transform_indices = @transform_4, window_bounds = array<i64: 8, 128>}]} {
    %c0 = arith.constant 0 : index
    %c0_0 = arith.constant 0 : index
    %0 = vector.load %arg1[%c0, %c0_0] : memref<8x128xbf16, #tpu.memory_space<vmem>>, vector<8x128xbf16>
    %c0_1 = arith.constant 0 : index
    %c0_2 = arith.constant 0 : index
    %1 = vector.load %arg2[%c0_1, %c0_2] : memref<128x128xbf16, #tpu.memory_space<vmem>>, vector<128x128xbf16>
    %cst = arith.constant dense<0.000000e+00> : vector<8x128xf32>
    %2 = tpu.matmul %0, %1, %cst {dimension_numbers = #tpu.dot_dimension_numbers<[1], [0], [0], [1], [0, 0, 1, 1], [], []>} : vector<8x128xbf16>, vector<128x128xbf16>, vector<8x128xf32> -> vector<8x128xf32>
    %c0_3 = arith.constant 0 : index
    %c0_4 = arith.constant 0 : index
    %3 = vector.load %arg3[%c0_3, %c0_4] : memref<1x128xf32, #tpu.memory_space<vmem>>, vector<1x128xf32>
    %4 = vector.broadcast %3 : vector<1x128xf32> to vector<8x128xf32>
    %5 = arith.addf %2, %4 : vector<8x128xf32>
    %6 = math.tanh %5 : vector<8x128xf32>
    %7 = arith.truncf %6 : vector<8x128xf32> to vector<8x128xbf16>
    %c0_5 = arith.constant 0 : index
    %c0_6 = arith.constant 0 : index
    %8 = vector.load %arg4[%c0_5, %c0_6] : memref<128x128xbf16, #tpu.memory_space<vmem>>, vector<128x128xbf16>
    %cst_7 = arith.constant dense<0.000000e+00> : vector<8x128xf32>
    %9 = tpu.matmul %7, %8, %cst_7 {dimension_numbers = #tpu.dot_dimension_numbers<[1], [0], [0], [1], [0, 0, 1, 1], [], []>} : vector<8x128xbf16>, vector<128x128xbf16>, vector<8x128xf32> -> vector<8x128xf32>
    %10 = arith.addf %5, %9 : vector<8x128xf32>
    %c0_8 = arith.constant 0 : index
    %c0_9 = arith.constant 0 : index
    %11 = vector.load %arg5[%c0_8, %c0_9] : memref<8x128xf32, #tpu.memory_space<vmem>>, vector<8x128xf32>
    tpu.vector_store %arg5[%c0_8, %c0_9], %10 {strides = array<i32>} : memref<8x128xf32, #tpu.memory_space<vmem>>, vector<8x128xf32>,
    return
  }
  func.func @transform_0(%arg0: i32) -> (i32, i32) {
    %c0_i32 = arith.constant 0 : i32
    %c0_i32_0 = arith.constant 0 : i32
    return %arg0, %c0_i32 : i32, i32
  }
  func.func @transform_1(%arg0: i32) -> (i32, i32) {
    %c0_i32 = arith.constant 0 : i32
    %c0_i32_0 = arith.constant 0 : i32
    %c0_i32_1 = arith.constant 0 : i32
    return %c0_i32, %c0_i32_0 : i32, i32
  }
  func.func @transform_2(%arg0: i32) -> (i32, i32) {
    %c0_i32 = arith.constant 0 : i32
    %c0_i32_0 = arith.constant 0 : i32
    %c0_i32_1 = arith.constant 0 : i32
    return %c0_i32, %c0_i32_0 : i32, i32
  }
  func.func @transform_3(%arg0: i32) -> (i32, i32) {
    %c0_i32 = arith.constant 0 : i32
    %c0_i32_0 = arith.constant 0 : i32
    %c0_i32_1 = arith.constant 0 : i32
    return %c0_i32, %c0_i32_0 : i32, i32
  }
  func.func @transform_4(%arg0: i32) -> (i32, i32) {
    %c0_i32 = arith.constant 0 : i32
    %c0_i32_0 = arith.constant 0 : i32
    return %arg0, %c0_i32 : i32, i32
  }
}

</mosaic_0001>

<llo_original>
// kernel: nnlm_forward.1
$region0: #{nnlm_forward.1}
  #allocation0 [shape = 'u32[]', space=smem, size = 0x4, offset = 0x4, fixed_abs, tag = 'smem constant byte address 0x4 - core index']
  #allocation1 [shape = 'u32[72,128]{1,0:T(1,128)}', space=vmem, size = 0x9000, scoped, tag = 'internal scratch']
  %s0 = inlined_call_operand.vmem [shape: bf16[8,128], index: 0, kind: input, shape index: {}]
  %s1 = inlined_call_operand.vmem [shape: bf16[128,128], index: 1, kind: input, shape index: {}]
  %s2 = inlined_call_operand.vmem [shape: f32[1,128], index: 2, kind: input, shape index: {}]
  %s3 = inlined_call_operand.vmem [shape: bf16[128,128], index: 3, kind: input, shape index: {}]
  %s4 = inlined_call_operand.vmem [shape: f32[8,128], index: 4, kind: output, shape index: {}]
  %s5 = sld [smem:[#allocation0]]
  $region26: #{nnlm_forward.1} parent=0
    _
  %s7 = ssub.s32 1, %s5
  %s8 = scalar_select 0, %s7, %s5
  // Predicated region
  $region2: #{nnlm_forward.1} parent=0 // pred_check
    _
  $region3: #{nnlm_forward.1} parent=0 // pred_check_branch
    %10 = sbr.rel (0) target = $region5
  $region4: #{nnlm_forward.1} parent=0 // pred_region
    _
  $region5: #{nnlm_forward.1} parent=0 // pred_fallthru
    _
  // Predicated region
  $region6: #{nnlm_forward.1} parent=0 // pred_check
    _
  $region7: #{nnlm_forward.1} parent=0 // pred_check_branch
    %12 = sbr.rel (0) target = $region9
  $region8: #{nnlm_forward.1} parent=0 // pred_region
    _
  $region9: #{nnlm_forward.1} parent=0 // pred_fallthru
    _
  // Predicated region
  $region10: #{nnlm_forward.1} parent=0 // pred_check
    _
  $region11: #{nnlm_forward.1} parent=0 // pred_check_branch
    %14 = sbr.rel (0) target = $region13
  $region12: #{nnlm_forward.1} parent=0 // pred_region
    _
  $region13: #{nnlm_forward.1} parent=0 // pred_fallthru
    _
  // Predicated region
  $region14: #{nnlm_forward.1} parent=0 // pred_check
    _
  $region15: #{nnlm_forward.1} parent=0 // pred_check_branch
    %16 = sbr.rel (0) target = $region17
  $region16: #{nnlm_forward.1} parent=0 // pred_region
    _
  $region17: #{nnlm_forward.1} parent=0 // pred_fallthru
    _
  %v17 = vld [vmem:[%s0] sm:$0xf]
  %v18 = vld [vmem:[%s1] sm:$0xf]
  %v19 = vld [vmem:[%s1 + $0x4] sm:$0xf]
  %v20 = vld [vmem:[%s1 + $0x8] sm:$0xf]
  %v21 = vld [vmem:[%s1 + $0xc] sm:$0xf]
  %v22 = vld [vmem:[%s1 + $0x10] sm:$0xf]
  %v23 = vld [vmem:[%s1 + $0x14] sm:$0xf]
  %v24 = vld [vmem:[%s1 + $0x18] sm:$0xf]
  %v25 = vld [vmem:[%s1 + $0x1c] sm:$0xf]
  %v26 = vld [vmem:[%s1 + $0x20] sm:$0xf]
  %v27 = vld [vmem:[%s1 + $0x24] sm:$0xf]
  %v28 = vld [vmem:[%s1 + $0x28] sm:$0xf]
  %v29 = vld [vmem:[%s1 + $0x2c] sm:$0xf]
  %v30 = vld [vmem:[%s1 + $0x30] sm:$0xf]
  %v31 = vld [vmem:[%s1 + $0x34] sm:$0xf]
  %v32 = vld [vmem:[%s1 + $0x38] sm:$0xf]
  %v33 = vld [vmem:[%s1 + $0x3c] sm:$0xf]
  %v34 = vld [vmem:[%s2] sm:$0x1]
  %v36 = vperm.slane %v34, 0
  %v54 = vunpack.c.l.b16 %v18
  %v55 = vunpack.c.l.b16 %v19
  %v56 = vunpack.c.l.b16 %v20
  %v57 = vunpack.c.l.b16 %v21
  %v58 = vunpack.c.l.b16 %v22
  %v59 = vunpack.c.l.b16 %v23
  %v60 = vunpack.c.l.b16 %v24
  %v61 = vunpack.c.l.b16 %v25
  %v62 = vunpack.c.l.b16 %v26
  %v63 = vunpack.c.l.b16 %v27
  %v64 = vunpack.c.l.b16 %v28
  %v65 = vunpack.c.l.b16 %v29
  %v66 = vunpack.c.l.b16 %v30
  %v67 = vunpack.c.l.b16 %v31
  %v68 = vunpack.c.l.b16 %v32
  %v69 = vunpack.c.l.b16 %v33
  %v70 = vpack.c.b16 %v55, %v54
  %v71 = vpack.c.b16 %v57, %v56
  %v72 = vpack.c.b16 %v59, %v58
  %v73 = vpack.c.b16 %v61, %v60
  %v74 = vpack.c.b16 %v63, %v62
  %v75 = vpack.c.b16 %v65, %v64
  %v76 = vpack.c.b16 %v67, %v66
  %v77 = vpack.c.b16 %v69, %v68
  %86 = vmatpush.bf16.msra.mxu0 %v77
  %87 = vmatpush.bf16.msra.mxu0 %v76
  %88 = vmatpush.bf16.msra.mxu0 %v75
  %89 = vmatpush.bf16.msra.mxu0 %v74
  %90 = vmatpush.bf16.msra.mxu0 %v73
  %91 = vmatpush.bf16.msra.mxu0 %v72
  %92 = vmatpush.bf16.msra.mxu0 %v71
  %93 = vmatpush.bf16.msra.mxu0 %v70
  %94 = vmatmul.bf16.gmra.mxu0 %v17
  %v95 = vpop.f32.mrf.mxu0
  %v96 = vadd.f32 %v36, %v95
  %v97 = vpop.f32.mrf.mxu0
  %98 = vdwg.mxu0
  %v99 = vtanh.pop %v96
  %v100 = vpack.c.bf16 %v99, %v99
  %v101 = vld [vmem:[%s3] sm:$0xf]
  %v102 = vld [vmem:[%s3 + $0x4] sm:$0xf]
  %v103 = vld [vmem:[%s3 + $0x8] sm:$0xf]
  %v104 = vld [vmem:[%s3 + $0xc] sm:$0xf]
  %v105 = vld [vmem:[%s3 + $0x10] sm:$0xf]
  %v106 = vld [vmem:[%s3 + $0x14] sm:$0xf]
  %v107 = vld [vmem:[%s3 + $0x18] sm:$0xf]
  %v108 = vld [vmem:[%s3 + $0x1c] sm:$0xf]
  %v109 = vld [vmem:[%s3 + $0x20] sm:$0xf]
  %v110 = vld [vmem:[%s3 + $0x24] sm:$0xf]
  %v111 = vld [vmem:[%s3 + $0x28] sm:$0xf]
  %v112 = vld [vmem:[%s3 + $0x2c] sm:$0xf]
  %v113 = vld [vmem:[%s3 + $0x30] sm:$0xf]
  %v114 = vld [vmem:[%s3 + $0x34] sm:$0xf]
  %v115 = vld [vmem:[%s3 + $0x38] sm:$0xf]
  %v116 = vld [vmem:[%s3 + $0x3c] sm:$0xf]
  %v133 = vunpack.c.l.b16 %v101
  %v134 = vunpack.c.l.b16 %v102
  %v135 = vunpack.c.l.b16 %v103
  %v136 = vunpack.c.l.b16 %v104
  %v137 = vunpack.c.l.b16 %v105
  %v138 = vunpack.c.l.b16 %v106
  %v139 = vunpack.c.l.b16 %v107
  %v140 = vunpack.c.l.b16 %v108
  %v141 = vunpack.c.l.b16 %v109
  %v142 = vunpack.c.l.b16 %v110
  %v143 = vunpack.c.l.b16 %v111
  %v144 = vunpack.c.l.b16 %v112
  %v145 = vunpack.c.l.b16 %v113
  %v146 = vunpack.c.l.b16 %v114
  %v147 = vunpack.c.l.b16 %v115
  %v148 = vunpack.c.l.b16 %v116
  %v149 = vpack.c.b16 %v134, %v133
  %v150 = vpack.c.b16 %v136, %v135
  %v151 = vpack.c.b16 %v138, %v137
  %v152 = vpack.c.b16 %v140, %v139
  %v153 = vpack.c.b16 %v142, %v141
  %v154 = vpack.c.b16 %v144, %v143
  %v155 = vpack.c.b16 %v146, %v145
  %v156 = vpack.c.b16 %v148, %v147
  %165 = vmatpush.bf16.msra.mxu0 %v156
  %166 = vmatpush.bf16.msra.mxu0 %v155
  %167 = vmatpush.bf16.msra.mxu0 %v154
  %168 = vmatpush.bf16.msra.mxu0 %v153
  %169 = vmatpush.bf16.msra.mxu0 %v152
  %170 = vmatpush.bf16.msra.mxu0 %v151
  %171 = vmatpush.bf16.msra.mxu0 %v150
  %172 = vmatpush.bf16.msra.mxu0 %v149
  %173 = vmatmul.bf16.gmra.mxu0 %v100
  %v174 = vpop.f32.mrf.mxu0
  %v175 = vadd.f32 0.0, %v174
  %v176 = vpop.f32.mrf.mxu0
  %177 = vdwg.mxu0
  %v178 = vadd.f32 %v96, %v175
  %179 = vst [vmem:[%s4] sm:$0xff] %v178
  // Predicated region
  $region18: #{nnlm_forward.1} parent=0 // pred_check
    _
  $region19: #{nnlm_forward.1} parent=0 // pred_check_branch
    %181 = sbr.rel (0) target = $region21
  $region20: #{nnlm_forward.1} parent=0 // pred_region
    _
  $region21: #{nnlm_forward.1} parent=0 // pred_fallthru
    _
  // Predicated region
  $region22: #{nnlm_forward.1} parent=0 // pred_check
    _
  $region23: #{nnlm_forward.1} parent=0 // pred_check_branch
    %183 = sbr.rel (0) target = $region25
  $region24: #{nnlm_forward.1} parent=0 // pred_region
    _
  $region25: #{nnlm_forward.1} parent=0 // pred_fallthru
    _

</llo_original>
